<compile_context>
chip_gen: v6e
topology: v6e:2x2x1
jax: 0.10.0
libtpu: 0.0.40
codegen_flags: <defaults>
</compile_context>

<pallas_src>
import math

import jax
import jax.numpy as jnp
from jax.experimental import pallas as pl
from jax.experimental.pallas import tpu as pltpu

_LANES = 128  # vreg lane width


def _sublane_gran(dtype) -> int:
    """Native sublane packing granularity (rows) for a dtype."""
    itemsize = jnp.dtype(dtype).itemsize
    if itemsize >= 4:
        return 8          # f32 / i32
    return 8 * (4 // itemsize)  # 16 for 2-byte (bf16/f16), 32 for 1-byte (i8/fp8)


def _diff_kernel(x1_ref, x2_ref, o_ref):
    # |x1 - x2| on the full lane-dense tile.  Casts (only present for mixed
    # input dtypes) run on otherwise-idle VALU slots; HBM stays the bottleneck.
    a = x1_ref[...].astype(o_ref.dtype)
    b = x2_ref[...].astype(o_ref.dtype)
    o_ref[...] = jnp.abs(a - b)


def diff(x1, x2, *, tile_rows: int = 8192, small_fallback_bytes: int = 256 * 1024):
    """Elementwise abs(x1 - x2), matching torch.abs(torch.sub(x1, x2)).

    Works for any (identically shaped) inputs; internally flattened to a
    lane-dense (rows, 128) layout and tiled over rows.
    """
    assert x1.shape == x2.shape, "Diff requires identically shaped inputs"
    out_dtype = jnp.promote_types(x1.dtype, x2.dtype)
    orig_shape = x1.shape
    n = math.prod(orig_shape)  # prod(()) == 1 handles scalars

    itemsizes = (jnp.dtype(x1.dtype).itemsize,
                 jnp.dtype(x2.dtype).itemsize,
                 jnp.dtype(out_dtype).itemsize)
    max_itemsize = max(itemsizes)

    # Empty / tiny inputs: kernel launch + layout plumbing would dwarf the
    # actual data movement — let XLA fuse the elementwise op instead.
    if n == 0 or n * max_itemsize < small_fallback_bytes:
        return jnp.abs(x1.astype(out_dtype) - x2.astype(out_dtype))

    # Dtype-aware sublane granularity (sub-32-bit dtypes pack along sublanes).
    gran = max(_sublane_gran(x1.dtype), _sublane_gran(x2.dtype),
               _sublane_gran(out_dtype))

    rows = pl.cdiv(n, _LANES)
    rows_padded = pl.cdiv(rows, gran) * gran   # pad only to one (gran x 128) tile
    n_padded = rows_padded * _LANES

    # Tile size: as big as possible (<= tile_rows), multiple of `gran`.
    tr = min(tile_rows, rows_padded)
    tr = max(gran, (tr // gran) * gran)

    x1f = jnp.ravel(x1)
    x2f = jnp.ravel(x2)
    if n_padded != n:
        pad = (0, n_padded - n)                 # < gran*128 elements, a few KiB
        x1f = jnp.pad(x1f, pad)
        x2f = jnp.pad(x2f, pad)
    x1m = x1f.reshape(rows_padded, _LANES)
    x2m = x2f.reshape(rows_padded, _LANES)

    grid = (pl.cdiv(rows_padded, tr),)          # ragged last block handled by Pallas

    # Double-buffered VMEM footprint: 2 buffers x (x1 + x2 + out) tiles + headroom.
    # ~26 MiB at the f32 defaults: overrides v5e's 16 MiB scoped default, fits
    # v6e's 128 MiB and v7x's 64 MiB physical VMEM.
    tile_bytes = tr * _LANES * sum(itemsizes)
    vmem_limit = int(2 * tile_bytes + (2 << 20))

    bytes_accessed = n * sum(itemsizes)

    out = pl.pallas_call(
        _diff_kernel,
        out_shape=jax.ShapeDtypeStruct((rows_padded, _LANES), out_dtype),
        grid=grid,
        in_specs=[
            pl.BlockSpec((tr, _LANES), lambda i: (i, 0)),
            pl.BlockSpec((tr, _LANES), lambda i: (i, 0)),
        ],
        out_specs=pl.BlockSpec((tr, _LANES), lambda i: (i, 0)),
        compiler_params=pltpu.CompilerParams(
            dimension_semantics=("parallel",),
            vmem_limit_bytes=vmem_limit),
        cost_estimate=pl.CostEstimate(
            flops=2 * n, transcendentals=0, bytes_accessed=bytes_accessed),
    )(x1m, x2m)

    if n_padded == n:
        return out.reshape(orig_shape)          # no padding -> no slice copy
    return out.reshape(-1)[:n].reshape(orig_shape)


if __name__ == "__main__":
    key = jax.random.PRNGKey(0)
    k1, k2, k3, k4, k5, k6 = jax.random.split(key, 6)

    # 1) Module-sized demo input (batch=2, channels=4, 16x16): tiny-input
    #    fast path (pure XLA fusion, no kernel launch).
    shape_small = (2, 4, 16, 16)
    a1 = jax.random.normal(k1, shape_small, jnp.float32)
    a2 = jax.random.normal(k2, shape_small, jnp.float32)
    out_small = jax.block_until_ready(diff(a1, a2))
    assert out_small.shape == shape_small
    assert jnp.array_equal(out_small, jnp.abs(a1 - a2))

    # 2) Pallas path, f32, ragged flattened size (exercises the small
    #    (gran x 128) pad, the ragged last grid block, and multi-step grid).
    shape_ragged = (2, 4, 127, 129)
    b1 = jax.random.normal(k3, shape_ragged, jnp.float32)
    b2 = jax.random.normal(k4, shape_ragged, jnp.float32)
    out_ragged = jax.block_until_ready(diff(b1, b2, tile_rows=384))
    assert out_ragged.shape == shape_ragged
    assert out_ragged.dtype == jnp.float32
    assert jnp.array_equal(out_ragged, jnp.abs(b1 - b2))

    # 3) Pallas path, bf16 (16-row sublane granularity), exact multiple
    #    (exercises the no-pad / no-slice direct reshape path).
    shape_bf16 = (2, 8, 64, 128)
    c1 = jax.random.normal(k5, shape_bf16, jnp.bfloat16)
    c2 = jax.random.normal(k6, shape_bf16, jnp.bfloat16)
    out_bf16 = jax.block_until_ready(diff(c1, c2))
    assert out_bf16.shape == shape_bf16
    assert out_bf16.dtype == jnp.bfloat16
    assert jnp.array_equal(out_bf16, jnp.abs(c1 - c2))

    print("KERNEL_OK")
</pallas_src>

<mosaic_0001>
module attributes {stable_mosaic.version = 11 : i64} {
  func.func @_diff_kernel(%arg0: i32, %arg1: memref<384x128xf32, #tpu.memory_space<vmem>>, %arg2: memref<384x128xf32, #tpu.memory_space<vmem>>, %arg3: memref<384x128xf32, #tpu.memory_space<vmem>>) attributes {dimension_semantics = [#tpu.dimension_semantics<parallel>], iteration_bounds = array<i64: 3>, scalar_prefetch = 0 : i64, scratch_operands = 0 : i64, tpu.core_type = #tpu.core_type<tc>, window_params = [{transform_indices = @transform_0, window_bounds = array<i64: 384, 128>}, {transform_indices = @transform_1, window_bounds = array<i64: 384, 128>}, {transform_indices = @transform_2, window_bounds = array<i64: 384, 128>}]} {
    %c0 = arith.constant 0 : index
    %c0_0 = arith.constant 0 : index
    %0 = vector.load %arg1[%c0, %c0_0] : memref<384x128xf32, #tpu.memory_space<vmem>>, vector<384x128xf32>
    %c0_1 = arith.constant 0 : index
    %c0_2 = arith.constant 0 : index
    %1 = vector.load %arg2[%c0_1, %c0_2] : memref<384x128xf32, #tpu.memory_space<vmem>>, vector<384x128xf32>
    %2 = arith.subf %0, %1 : vector<384x128xf32>
    %3 = math.absf %2 : vector<384x128xf32>
    %c0_3 = arith.constant 0 : index
    %c0_4 = arith.constant 0 : index
    %4 = vector.load %arg3[%c0_3, %c0_4] : memref<384x128xf32, #tpu.memory_space<vmem>>, vector<384x128xf32>
    tpu.vector_store %arg3[%c0_3, %c0_4], %3 {strides = array<i32>} : memref<384x128xf32, #tpu.memory_space<vmem>>, vector<384x128xf32>,
    return
  }
  func.func @transform_0(%arg0: i32) -> (i32, i32) {
    %c0_i32 = arith.constant 0 : i32
    %c0_i32_0 = arith.constant 0 : i32
    return %arg0, %c0_i32 : i32, i32
  }
  func.func @transform_1(%arg0: i32) -> (i32, i32) {
    %c0_i32 = arith.constant 0 : i32
    %c0_i32_0 = arith.constant 0 : i32
    return %arg0, %c0_i32 : i32, i32
  }
  func.func @transform_2(%arg0: i32) -> (i32, i32) {
    %c0_i32 = arith.constant 0 : i32
    %c0_i32_0 = arith.constant 0 : i32
    return %arg0, %c0_i32 : i32, i32
  }
}

</mosaic_0001>

<llo_original>
// kernel: tpu_custom_call.1
$region0: #{tpu_custom_call.1}
  #allocation0 [shape = 'u32[]', space=smem, size = 0x4, offset = 0x4, fixed_abs, tag = 'smem constant byte address 0x4 - core index']
  #allocation1 [shape = 'u32[144,128]{1,0:T(1,128)}', space=vmem, size = 0x12000, scoped, tag = 'internal scratch']
  %s0 = inlined_call_operand.hbm [shape: f32[1024,128], index: 0, kind: input, shape index: {}]
  %s1 = inlined_call_operand.hbm [shape: f32[1024,128], index: 1, kind: input, shape index: {}]
  %s2 = inlined_call_operand.hbm [shape: f32[1024,128], index: 2, kind: output, shape index: {}]
  %s3 = sld [smem:[#allocation0]]
  $region49: #{tpu_custom_call.1} parent=0
    _
  %s5 = ssub.s32 1, %s3
  %s6 = scalar_select 0, %s5, %s3
  $region1: #{tpu_custom_call.1} parent=0
    #allocation2 [shape = 'u8[393216]{0}', space=vmem, size = 0x60000, scoped, tag = 'input window, operand 0']
    #allocation3 [shape = 's32[2]{0}', space=sflag, size = 0x8, scoped, tag = 'scoped memory for tpu_custom_call.1']
    #allocation4 [shape = 's32[2]{0}', space=sflag, size = 0x8, scoped, tag = 'scoped memory for tpu_custom_call.1']
    #allocation5 [shape = 'u8[393216]{0}', space=vmem, size = 0x60000, scoped, tag = 'input window, operand 1']
    #allocation6 [shape = 's32[2]{0}', space=sflag, size = 0x8, scoped, tag = 'scoped memory for tpu_custom_call.1']
    #allocation7 [shape = 'u8[393216]{0}', space=vmem, size = 0x60000, scoped, tag = 'output window, operand 0']
    %7 = vsyncpa [#allocation3], 0
    %s8 = scalar_lea.sflag [#allocation3], 1
    %9 = vsyncpa %s8, 0
    %10 = vsyncpa [#allocation6], 0
    %s11 = scalar_lea.sflag [#allocation6], 1
    %12 = vsyncpa %s11, 0
    %13 = vsyncpa [#allocation4], 0
    %s14 = scalar_lea.sflag [#allocation4], 1
    %15 = vsyncpa %s14, 0
    loop: start=0, step=1, limit=5
    $region2: #{tpu_custom_call.1} parent=1 // loop_pre_header
      _
    $region3: #{tpu_custom_call.1} parent=1 // loop_header
      %s17 = sphi 0, %s21
      %p18 = scmp.ge.s32.totalorder %s17, 5
      %s27 = sphi 0, %s29
      %s30 = sphi 0, %s27
      %s31 = sphi 0, %s30
      %s47 = sphi 0, %s31
      %s53 = sphi 0, %s55
      %s56 = sphi 0, %s53
      %s57 = sphi 0, %s56
      %s73 = sphi 0, %s57
      %s79 = sphi 0, %s81
      %s82 = sphi 0, %s79
      %s83 = sphi 0, %s82
      %s99 = sphi 0, %s83
    $region4: #{tpu_custom_call.1} parent=1 // loop_header_branch
      %20 = sbr.rel (%p18) target = $region8
    $region5: #{tpu_custom_call.1} parent=1 // loop_body
      %s22 = ssub.s32 %s17, 1
      %s23 = ssub.s32 %s17, 2
      %s24 = sadd.s32 %s17, 1
      %s25 = ssub.s32 %s17, %s24
      %p26 = scmp.eq.s32.totalorder %s25, 0
      %s28 = sadd.s32 %s27, 1
      %s29 = scalar_select %p26, %s27, %s28
      %p32 = pneg %p26
      %p33 = scmp.eq.s32.totalorder %s17, 2
      %p34 = por %p32, %p33
      %p35 = scmp.ne.s32.totalorder %s27, %s30
      %p36 = scmp.eq.s32.totalorder %s17, 0
      %p37 = por %p35, %p36
      %p38 = scmp.ne.s32.totalorder %s27, %s30
      %p39 = scmp.eq.s32.totalorder %s22, 2
      %p40 = por %p38, %p39
      %p41 = scmp.ne.s32.totalorder %s30, %s31
      %p42 = scmp.eq.s32.totalorder %s22, 0
      %p43 = por %p41, %p42
      %p44 = scmp.ne.s32.totalorder %s30, %s31
      %p45 = scmp.eq.s32.totalorder %s23, 2
      %p46 = por %p44, %p45
      %p48 = scmp.ne.s32.totalorder %s31, %s47
      %p49 = scmp.eq.s32.totalorder %s23, 0
      %p50 = por %p48, %p49
      %s51 = ssub.s32 %s17, %s24
      %p52 = scmp.eq.s32.totalorder %s51, 0
      %s54 = sadd.s32 %s53, 1
      %s55 = scalar_select %p52, %s53, %s54
      %p58 = pneg %p52
      %p59 = scmp.eq.s32.totalorder %s17, 2
      %p60 = por %p58, %p59
      %p61 = scmp.ne.s32.totalorder %s53, %s56
      %p62 = scmp.eq.s32.totalorder %s17, 0
      %p63 = por %p61, %p62
      %p64 = scmp.ne.s32.totalorder %s53, %s56
      %p65 = scmp.eq.s32.totalorder %s22, 2
      %p66 = por %p64, %p65
      %p67 = scmp.ne.s32.totalorder %s56, %s57
      %p68 = scmp.eq.s32.totalorder %s22, 0
      %p69 = por %p67, %p68
      %p70 = scmp.ne.s32.totalorder %s56, %s57
      %p71 = scmp.eq.s32.totalorder %s23, 2
      %p72 = por %p70, %p71
      %p74 = scmp.ne.s32.totalorder %s57, %s73
      %p75 = scmp.eq.s32.totalorder %s23, 0
      %p76 = por %p74, %p75
      %s77 = ssub.s32 %s17, %s24
      %p78 = scmp.eq.s32.totalorder %s77, 0
      %s80 = sadd.s32 %s79, 1
      %s81 = scalar_select %p78, %s79, %s80
      %p84 = pneg %p78
      %p85 = scmp.eq.s32.totalorder %s17, 2
      %p86 = por %p84, %p85
      %p87 = scmp.ne.s32.totalorder %s79, %s82
      %p88 = scmp.eq.s32.totalorder %s17, 0
      %p89 = por %p87, %p88
      %p90 = scmp.ne.s32.totalorder %s79, %s82
      %p91 = scmp.eq.s32.totalorder %s22, 2
      %p92 = por %p90, %p91
      %p93 = scmp.ne.s32.totalorder %s82, %s83
      %p94 = scmp.eq.s32.totalorder %s22, 0
      %p95 = por %p93, %p94
      %p96 = scmp.ne.s32.totalorder %s82, %s83
      %p97 = scmp.eq.s32.totalorder %s23, 2
      %p98 = por %p96, %p97
      %p100 = scmp.ne.s32.totalorder %s83, %s99
      %p101 = scmp.eq.s32.totalorder %s23, 0
      %p102 = por %p100, %p101
      %p103 = scmp.le.s32.totalorder 1, %s17
      %p104 = scmp.lt.s32.totalorder %s17, 4
      %p105 = pnand %p103, %p104
      %p106 = pneg %p105
      // Predicated region
      $region9: #{tpu_custom_call.1} parent=5 // pred_check
        _
      $region10: #{tpu_custom_call.1} parent=5 // pred_check_branch
        %108 = sbr.rel (%p105) target = $region12
      $region11: #{tpu_custom_call.1} parent=5 // pred_region
        %s109 = ssub.s32 %s17, 1
      $region12: #{tpu_custom_call.1} parent=5 // pred_fallthru
        _
      %p110 = scmp.lt.s32.totalorder %s17, 3
      // Predicated region
      $region13: #{tpu_custom_call.1} parent=5 // pred_check
        %p111 = pneg %p110
      $region14: #{tpu_custom_call.1} parent=5 // pred_check_branch
        %113 = sbr.rel (%p111) target = $region16
      $region15: #{tpu_custom_call.1} parent=5 // pred_region
        // Predicated region
        $region17: #{tpu_custom_call.1} parent=15 // pred_check
          %p114 = pneg %p37
        $region18: #{tpu_custom_call.1} parent=15 // pred_check_branch
          %116 = sbr.rel (%p114) target = $region20
        $region19: #{tpu_custom_call.1} parent=15 // pred_region
          %s117 = sand.u32 %s27, 1
          %s118 = scalar_lea.sflag [#allocation3], %s117
          %s119 = sand.u32 %s27, 1
          %s120 = smul.addr %s119, 384
          %s121 = scalar_lea.vmem [#allocation2], %s120
          %s122 = smul.u32 48, %s17
          %s123 = ssub.s32 128, %s122
          %p124 = scmp.lt.s32.totalorder %s123, 48
          %s125 = scalar_select %p124, %s123, 48
          %s126 = smul.u32 128, %s125
          %s128 = ssub.s32 6144, %s126
          %129 = vsyncadd %s118, %s128
          %p130 = scmp.ne.s32.totalorder 0, %s126
          %s131 = smul.addr %s122, 128
          %s132 = scalar_lea.hbm %s0, %s131
          %s133 = smul.u32 8, %s125
          %s134 = sshll.u32 %s121, 4
          %s135 = int_to_ptr.vmem [resolvable:$true] %s134
          %s136 = sshll.u32 %s133, 4
          %140 = dma.hbm_to_vmem [thread:$0]  (%p130), %s132, %s136, %s135, %s118, 128, 128, 8
        $region20: #{tpu_custom_call.1} parent=15 // pred_fallthru
          _
        // Predicated region
        $region21: #{tpu_custom_call.1} parent=15 // pred_check
          %p141 = pneg %p63
        $region22: #{tpu_custom_call.1} parent=15 // pred_check_branch
          %143 = sbr.rel (%p141) target = $region24
        $region23: #{tpu_custom_call.1} parent=15 // pred_region
          %s144 = sand.u32 %s53, 1
          %s145 = scalar_lea.sflag [#allocation6], %s144
          %s146 = sand.u32 %s53, 1
          %s147 = smul.addr %s146, 384
          %s148 = scalar_lea.vmem [#allocation5], %s147
          %s149 = smul.u32 48, %s17
          %s150 = ssub.s32 128, %s149
          %p151 = scmp.lt.s32.totalorder %s150, 48
          %s152 = scalar_select %p151, %s150, 48
          %s153 = smul.u32 128, %s152
          %s155 = ssub.s32 6144, %s153
          %156 = vsyncadd %s145, %s155
          %p157 = scmp.ne.s32.totalorder 0, %s153
          %s158 = smul.addr %s149, 128
          %s159 = scalar_lea.hbm %s1, %s158
          %s160 = smul.u32 8, %s152
          %s161 = sshll.u32 %s148, 4
          %s162 = int_to_ptr.vmem [resolvable:$true] %s161
          %s163 = sshll.u32 %s160, 4
          %167 = dma.hbm_to_vmem [thread:$0]  (%p157), %s159, %s163, %s162, %s145, 128, 128, 8
        $region24: #{tpu_custom_call.1} parent=15 // pred_fallthru
          _
      $region16: #{tpu_custom_call.1} parent=5 // pred_fallthru
        _
      %p168 = scmp.le.s32.totalorder 1, %s17
      %p169 = scmp.lt.s32.totalorder %s17, 4
      %p170 = pnand %p168, %p169
      %p171 = pneg %p170
      // Predicated region
      $region25: #{tpu_custom_call.1} parent=5 // pred_check
        _
      $region26: #{tpu_custom_call.1} parent=5 // pred_check_branch
        %173 = sbr.rel (%p170) target = $region28
      $region27: #{tpu_custom_call.1} parent=5 // pred_region
        %s174 = ssub.s32 %s17, 1
        %s175 = sand.u32 %s30, 1
        %s176 = scalar_lea.sflag [#allocation3], %s175
        %s177 = sand.u32 %s30, 1
        %s178 = smul.addr %s177, 384
        %s179 = scalar_lea.vmem [#allocation2], %s178
        // Predicated region
        $region29: #{tpu_custom_call.1} parent=27 // pred_check
          %p180 = pneg %p43
        $region30: #{tpu_custom_call.1} parent=27 // pred_check_branch
          %182 = sbr.rel (%p180) target = $region32
        $region31: #{tpu_custom_call.1} parent=27 // pred_region
          %183 = dma.done %s176, 6144
        $region32: #{tpu_custom_call.1} parent=27 // pred_fallthru
          _
        %s184 = sand.u32 %s56, 1
        %s185 = scalar_lea.sflag [#allocation6], %s184
        %s186 = sand.u32 %s56, 1
        %s187 = smul.addr %s186, 384
        %s188 = scalar_lea.vmem [#allocation5], %s187
        // Predicated region
        $region33: #{tpu_custom_call.1} parent=27 // pred_check
          %p189 = pneg %p69
        $region34: #{tpu_custom_call.1} parent=27 // pred_check_branch
          %191 = sbr.rel (%p189) target = $region36
        $region35: #{tpu_custom_call.1} parent=27 // pred_region
          %192 = dma.done %s185, 6144
        $region36: #{tpu_custom_call.1} parent=27 // pred_fallthru
          _
        %s193 = sand.u32 %s30, 1
        %s194 = scalar_lea.sflag [#allocation3], %s193
        %s195 = sand.u32 %s30, 1
        %s196 = smul.addr %s195, 384
        %s197 = scalar_lea.vmem [#allocation2], %s196
        %p198 = pneg %p43
        %p199 = pneg %p40
        %s200 = sand.u32 %s56, 1
        %s201 = scalar_lea.sflag [#allocation6], %s200
        %s202 = sand.u32 %s56, 1
        %s203 = smul.addr %s202, 384
        %s204 = scalar_lea.vmem [#allocation5], %s203
        %p205 = pneg %p69
        %p206 = pneg %p66
        %p207 = pneg %p95
        %p208 = pneg %p92
        %s209 = sand.u32 %s82, 1
        %s210 = scalar_lea.sflag [#allocation4], %s209
        %s211 = sand.u32 %s82, 1
        %s212 = smul.addr %s211, 384
        %s213 = scalar_lea.vmem [#allocation7], %s212
        %s214 = smul.u32 48, %s22
        %s215 = ssub.s32 128, %s214
        %p216 = scmp.lt.s32.totalorder %s215, 48
        %s217 = scalar_select %p216, %s215, 48
        %s218 = smul.u32 128, %s217
        %s219 = smul.u32 48, %s22
        %s220 = ssub.s32 128, %s219
        %p221 = scmp.lt.s32.totalorder %s220, 48
        %s222 = scalar_select %p221, %s220, 48
        %s223 = smul.u32 128, %s222
        %s224 = smul.u32 48, %s22
        %s225 = ssub.s32 128, %s224
        %p226 = scmp.lt.s32.totalorder %s225, 48
        %s227 = scalar_select %p226, %s225, 48
        %s228 = smul.u32 128, %s227
        %v229 = vld [vmem:[%s179] sm:$0xff]
        %v230 = vld [vmem:[%s179 + $0x8] sm:$0xff]
        %v231 = vld [vmem:[%s179 + $0x10] sm:$0xff]
        %v232 = vld [vmem:[%s179 + $0x18] sm:$0xff]
        %v233 = vld [vmem:[%s179 + $0x20] sm:$0xff]
        %v234 = vld [vmem:[%s179 + $0x28] sm:$0xff]
        %v235 = vld [vmem:[%s179 + $0x30] sm:$0xff]
        %v236 = vld [vmem:[%s179 + $0x38] sm:$0xff]
        %v237 = vld [vmem:[%s179 + $0x40] sm:$0xff]
        %v238 = vld [vmem:[%s179 + $0x48] sm:$0xff]
        %v239 = vld [vmem:[%s179 + $0x50] sm:$0xff]
        %v240 = vld [vmem:[%s179 + $0x58] sm:$0xff]
        %v241 = vld [vmem:[%s179 + $0x60] sm:$0xff]
        %v242 = vld [vmem:[%s179 + $0x68] sm:$0xff]
        %v243 = vld [vmem:[%s179 + $0x70] sm:$0xff]
        %v244 = vld [vmem:[%s179 + $0x78] sm:$0xff]
        %v245 = vld [vmem:[%s179 + $0x80] sm:$0xff]
        %v246 = vld [vmem:[%s179 + $0x88] sm:$0xff]
        %v247 = vld [vmem:[%s179 + $0x90] sm:$0xff]
        %v248 = vld [vmem:[%s179 + $0x98] sm:$0xff]
        %v249 = vld [vmem:[%s179 + $0xa0] sm:$0xff]
        %v250 = vld [vmem:[%s179 + $0xa8] sm:$0xff]
        %v251 = vld [vmem:[%s179 + $0xb0] sm:$0xff]
        %v252 = vld [vmem:[%s179 + $0xb8] sm:$0xff]
        %v253 = vld [vmem:[%s179 + $0xc0] sm:$0xff]
        %v254 = vld [vmem:[%s179 + $0xc8] sm:$0xff]
        %v255 = vld [vmem:[%s179 + $0xd0] sm:$0xff]
        %v256 = vld [vmem:[%s179 + $0xd8] sm:$0xff]
        %v257 = vld [vmem:[%s179 + $0xe0] sm:$0xff]
        %v258 = vld [vmem:[%s179 + $0xe8] sm:$0xff]
        %v259 = vld [vmem:[%s179 + $0xf0] sm:$0xff]
        %v260 = vld [vmem:[%s179 + $0xf8] sm:$0xff]
        %v261 = vld [vmem:[%s179 + $0x100] sm:$0xff]
        %v262 = vld [vmem:[%s179 + $0x108] sm:$0xff]
        %v263 = vld [vmem:[%s179 + $0x110] sm:$0xff]
        %v264 = vld [vmem:[%s179 + $0x118] sm:$0xff]
        %v265 = vld [vmem:[%s179 + $0x120] sm:$0xff]
        %v266 = vld [vmem:[%s179 + $0x128] sm:$0xff]
        %v267 = vld [vmem:[%s179 + $0x130] sm:$0xff]
        %v268 = vld [vmem:[%s179 + $0x138] sm:$0xff]
        %v269 = vld [vmem:[%s179 + $0x140] sm:$0xff]
        %v270 = vld [vmem:[%s179 + $0x148] sm:$0xff]
        %v271 = vld [vmem:[%s179 + $0x150] sm:$0xff]
        %v272 = vld [vmem:[%s179 + $0x158] sm:$0xff]
        %v273 = vld [vmem:[%s179 + $0x160] sm:$0xff]
        %v274 = vld [vmem:[%s179 + $0x168] sm:$0xff]
        %v275 = vld [vmem:[%s179 + $0x170] sm:$0xff]
        %v276 = vld [vmem:[%s179 + $0x178] sm:$0xff]
        %v277 = vld [vmem:[%s188] sm:$0xff]
        %v278 = vld [vmem:[%s188 + $0x8] sm:$0xff]
        %v279 = vld [vmem:[%s188 + $0x10] sm:$0xff]
        %v280 = vld [vmem:[%s188 + $0x18] sm:$0xff]
        %v281 = vld [vmem:[%s188 + $0x20] sm:$0xff]
        %v282 = vld [vmem:[%s188 + $0x28] sm:$0xff]
        %v283 = vld [vmem:[%s188 + $0x30] sm:$0xff]
        %v284 = vld [vmem:[%s188 + $0x38] sm:$0xff]
        %v285 = vld [vmem:[%s188 + $0x40] sm:$0xff]
        %v286 = vld [vmem:[%s188 + $0x48] sm:$0xff]
        %v287 = vld [vmem:[%s188 + $0x50] sm:$0xff]
        %v288 = vld [vmem:[%s188 + $0x58] sm:$0xff]
        %v289 = vld [vmem:[%s188 + $0x60] sm:$0xff]
        %v290 = vld [vmem:[%s188 + $0x68] sm:$0xff]
        %v291 = vld [vmem:[%s188 + $0x70] sm:$0xff]
        %v292 = vld [vmem:[%s188 + $0x78] sm:$0xff]
        %v293 = vld [vmem:[%s188 + $0x80] sm:$0xff]
        %v294 = vld [vmem:[%s188 + $0x88] sm:$0xff]
        %v295 = vld [vmem:[%s188 + $0x90] sm:$0xff]
        %v296 = vld [vmem:[%s188 + $0x98] sm:$0xff]
        %v297 = vld [vmem:[%s188 + $0xa0] sm:$0xff]
        %v298 = vld [vmem:[%s188 + $0xa8] sm:$0xff]
        %v299 = vld [vmem:[%s188 + $0xb0] sm:$0xff]
        %v300 = vld [vmem:[%s188 + $0xb8] sm:$0xff]
        %v301 = vld [vmem:[%s188 + $0xc0] sm:$0xff]
        %v302 = vld [vmem:[%s188 + $0xc8] sm:$0xff]
        %v303 = vld [vmem:[%s188 + $0xd0] sm:$0xff]
        %v304 = vld [vmem:[%s188 + $0xd8] sm:$0xff]
        %v305 = vld [vmem:[%s188 + $0xe0] sm:$0xff]
        %v306 = vld [vmem:[%s188 + $0xe8] sm:$0xff]
        %v307 = vld [vmem:[%s188 + $0xf0] sm:$0xff]
        %v308 = vld [vmem:[%s188 + $0xf8] sm:$0xff]
        %v309 = vld [vmem:[%s188 + $0x100] sm:$0xff]
        %v310 = vld [vmem:[%s188 + $0x108] sm:$0xff]
        %v311 = vld [vmem:[%s188 + $0x110] sm:$0xff]
        %v312 = vld [vmem:[%s188 + $0x118] sm:$0xff]
        %v313 = vld [vmem:[%s188 + $0x120] sm:$0xff]
        %v314 = vld [vmem:[%s188 + $0x128] sm:$0xff]
        %v315 = vld [vmem:[%s188 + $0x130] sm:$0xff]
        %v316 = vld [vmem:[%s188 + $0x138] sm:$0xff]
        %v317 = vld [vmem:[%s188 + $0x140] sm:$0xff]
        %v318 = vld [vmem:[%s188 + $0x148] sm:$0xff]
        %v319 = vld [vmem:[%s188 + $0x150] sm:$0xff]
        %v320 = vld [vmem:[%s188 + $0x158] sm:$0xff]
        %v321 = vld [vmem:[%s188 + $0x160] sm:$0xff]
        %v322 = vld [vmem:[%s188 + $0x168] sm:$0xff]
        %v323 = vld [vmem:[%s188 + $0x170] sm:$0xff]
        %v324 = vld [vmem:[%s188 + $0x178] sm:$0xff]
        %v325 = vsub.f32 %v229, %v277
        %v326 = vsub.f32 %v230, %v278
        %v327 = vsub.f32 %v231, %v279
        %v328 = vsub.f32 %v232, %v280
        %v329 = vsub.f32 %v233, %v281
        %v330 = vsub.f32 %v234, %v282
        %v331 = vsub.f32 %v235, %v283
        %v332 = vsub.f32 %v236, %v284
        %v333 = vsub.f32 %v237, %v285
        %v334 = vsub.f32 %v238, %v286
        %v335 = vsub.f32 %v239, %v287
        %v336 = vsub.f32 %v240, %v288
        %v337 = vsub.f32 %v241, %v289
        %v338 = vsub.f32 %v242, %v290
        %v339 = vsub.f32 %v243, %v291
        %v340 = vsub.f32 %v244, %v292
        %v341 = vsub.f32 %v245, %v293
        %v342 = vsub.f32 %v246, %v294
        %v343 = vsub.f32 %v247, %v295
        %v344 = vsub.f32 %v248, %v296
        %v345 = vsub.f32 %v249, %v297
        %v346 = vsub.f32 %v250, %v298
        %v347 = vsub.f32 %v251, %v299
        %v348 = vsub.f32 %v252, %v300
        %v349 = vsub.f32 %v253, %v301
        %v350 = vsub.f32 %v254, %v302
        %v351 = vsub.f32 %v255, %v303
        %v352 = vsub.f32 %v256, %v304
        %v353 = vsub.f32 %v257, %v305
        %v354 = vsub.f32 %v258, %v306
        %v355 = vsub.f32 %v259, %v307
        %v356 = vsub.f32 %v260, %v308
        %v357 = vsub.f32 %v261, %v309
        %v358 = vsub.f32 %v262, %v310
        %v359 = vsub.f32 %v263, %v311
        %v360 = vsub.f32 %v264, %v312
        %v361 = vsub.f32 %v265, %v313
        %v362 = vsub.f32 %v266, %v314
        %v363 = vsub.f32 %v267, %v315
        %v364 = vsub.f32 %v268, %v316
        %v365 = vsub.f32 %v269, %v317
        %v366 = vsub.f32 %v270, %v318
        %v367 = vsub.f32 %v271, %v319
        %v368 = vsub.f32 %v272, %v320
        %v369 = vsub.f32 %v273, %v321
        %v370 = vsub.f32 %v274, %v322
        %v371 = vsub.f32 %v275, %v323
        %v372 = vsub.f32 %v276, %v324
        %v373 = vand.u32 2147483647, %v325
        %v374 = vand.u32 2147483647, %v326
        %v375 = vand.u32 2147483647, %v327
        %v376 = vand.u32 2147483647, %v328
        %v377 = vand.u32 2147483647, %v329
        %v378 = vand.u32 2147483647, %v330
        %v379 = vand.u32 2147483647, %v331
        %v380 = vand.u32 2147483647, %v332
        %v381 = vand.u32 2147483647, %v333
        %v382 = vand.u32 2147483647, %v334
        %v383 = vand.u32 2147483647, %v335
        %v384 = vand.u32 2147483647, %v336
        %v385 = vand.u32 2147483647, %v337
        %v386 = vand.u32 2147483647, %v338
        %v387 = vand.u32 2147483647, %v339
        %v388 = vand.u32 2147483647, %v340
        %v389 = vand.u32 2147483647, %v341
        %v390 = vand.u32 2147483647, %v342
        %v391 = vand.u32 2147483647, %v343
        %v392 = vand.u32 2147483647, %v344
        %v393 = vand.u32 2147483647, %v345
        %v394 = vand.u32 2147483647, %v346
        %v395 = vand.u32 2147483647, %v347
        %v396 = vand.u32 2147483647, %v348
        %v397 = vand.u32 2147483647, %v349
        %v398 = vand.u32 2147483647, %v350
        %v399 = vand.u32 2147483647, %v351
        %v400 = vand.u32 2147483647, %v352
        %v401 = vand.u32 2147483647, %v353
        %v402 = vand.u32 2147483647, %v354
        %v403 = vand.u32 2147483647, %v355
        %v404 = vand.u32 2147483647, %v356
        %v405 = vand.u32 2147483647, %v357
        %v406 = vand.u32 2147483647, %v358
        %v407 = vand.u32 2147483647, %v359
        %v408 = vand.u32 2147483647, %v360
        %v409 = vand.u32 2147483647, %v361
        %v410 = vand.u32 2147483647, %v362
        %v411 = vand.u32 2147483647, %v363
        %v412 = vand.u32 2147483647, %v364
        %v413 = vand.u32 2147483647, %v365
        %v414 = vand.u32 2147483647, %v366
        %v415 = vand.u32 2147483647, %v367
        %v416 = vand.u32 2147483647, %v368
        %v417 = vand.u32 2147483647, %v369
        %v418 = vand.u32 2147483647, %v370
        %v419 = vand.u32 2147483647, %v371
        %v420 = vand.u32 2147483647, %v372
        %421 = vst [vmem:[%s213] sm:$0xff] %v373
        %422 = vst [vmem:[%s213 + $0x8] sm:$0xff] %v374
        %423 = vst [vmem:[%s213 + $0x10] sm:$0xff] %v375
        %424 = vst [vmem:[%s213 + $0x18] sm:$0xff] %v376
        %425 = vst [vmem:[%s213 + $0x20] sm:$0xff] %v377
        %426 = vst [vmem:[%s213 + $0x28] sm:$0xff] %v378
        %427 = vst [vmem:[%s213 + $0x30] sm:$0xff] %v379
        %428 = vst [vmem:[%s213 + $0x38] sm:$0xff] %v380
        %429 = vst [vmem:[%s213 + $0x40] sm:$0xff] %v381
        %430 = vst [vmem:[%s213 + $0x48] sm:$0xff] %v382
        %431 = vst [vmem:[%s213 + $0x50] sm:$0xff] %v383
        %432 = vst [vmem:[%s213 + $0x58] sm:$0xff] %v384
        %433 = vst [vmem:[%s213 + $0x60] sm:$0xff] %v385
        %434 = vst [vmem:[%s213 + $0x68] sm:$0xff] %v386
        %435 = vst [vmem:[%s213 + $0x70] sm:$0xff] %v387
        %436 = vst [vmem:[%s213 + $0x78] sm:$0xff] %v388
        %437 = vst [vmem:[%s213 + $0x80] sm:$0xff] %v389
        %438 = vst [vmem:[%s213 + $0x88] sm:$0xff] %v390
        %439 = vst [vmem:[%s213 + $0x90] sm:$0xff] %v391
        %440 = vst [vmem:[%s213 + $0x98] sm:$0xff] %v392
        %441 = vst [vmem:[%s213 + $0xa0] sm:$0xff] %v393
        %442 = vst [vmem:[%s213 + $0xa8] sm:$0xff] %v394
        %443 = vst [vmem:[%s213 + $0xb0] sm:$0xff] %v395
        %444 = vst [vmem:[%s213 + $0xb8] sm:$0xff] %v396
        %445 = vst [vmem:[%s213 + $0xc0] sm:$0xff] %v397
        %446 = vst [vmem:[%s213 + $0xc8] sm:$0xff] %v398
        %447 = vst [vmem:[%s213 + $0xd0] sm:$0xff] %v399
        %448 = vst [vmem:[%s213 + $0xd8] sm:$0xff] %v400
        %449 = vst [vmem:[%s213 + $0xe0] sm:$0xff] %v401
        %450 = vst [vmem:[%s213 + $0xe8] sm:$0xff] %v402
        %451 = vst [vmem:[%s213 + $0xf0] sm:$0xff] %v403
        %452 = vst [vmem:[%s213 + $0xf8] sm:$0xff] %v404
        %453 = vst [vmem:[%s213 + $0x100] sm:$0xff] %v405
        %454 = vst [vmem:[%s213 + $0x108] sm:$0xff] %v406
        %455 = vst [vmem:[%s213 + $0x110] sm:$0xff] %v407
        %456 = vst [vmem:[%s213 + $0x118] sm:$0xff] %v408
        %457 = vst [vmem:[%s213 + $0x120] sm:$0xff] %v409
        %458 = vst [vmem:[%s213 + $0x128] sm:$0xff] %v410
        %459 = vst [vmem:[%s213 + $0x130] sm:$0xff] %v411
        %460 = vst [vmem:[%s213 + $0x138] sm:$0xff] %v412
        %461 = vst [vmem:[%s213 + $0x140] sm:$0xff] %v413
        %462 = vst [vmem:[%s213 + $0x148] sm:$0xff] %v414
        %463 = vst [vmem:[%s213 + $0x150] sm:$0xff] %v415
        %464 = vst [vmem:[%s213 + $0x158] sm:$0xff] %v416
        %465 = vst [vmem:[%s213 + $0x160] sm:$0xff] %v417
        %466 = vst [vmem:[%s213 + $0x168] sm:$0xff] %v418
        %467 = vst [vmem:[%s213 + $0x170] sm:$0xff] %v419
        %468 = vst [vmem:[%s213 + $0x178] sm:$0xff] %v420
        %s469 = sand.u32 %s82, 1
        %s470 = scalar_lea.sflag [#allocation4], %s469
        %s471 = sand.u32 %s82, 1
        %s472 = smul.addr %s471, 384
        %s473 = scalar_lea.vmem [#allocation7], %s472
        // Predicated region
        $region37: #{tpu_custom_call.1} parent=27 // pred_check
          %p474 = pneg %p92
        $region38: #{tpu_custom_call.1} parent=27 // pred_check_branch
          %476 = sbr.rel (%p474) target = $region40
        $region39: #{tpu_custom_call.1} parent=27 // pred_region
          %s477 = smul.u32 48, %s22
          %s478 = ssub.s32 128, %s477
          %p479 = scmp.lt.s32.totalorder %s478, 48
          %s480 = scalar_select %p479, %s478, 48
          %s481 = smul.u32 128, %s480
          %s483 = ssub.s32 6144, %s481
          %484 = vsyncadd %s470, %s483
          %p485 = scmp.ne.s32.totalorder 0, %s481
          %s486 = smul.addr %s477, 128
          %s487 = scalar_lea.hbm %s2, %s486
          %s488 = smul.u32 8, %s480
          %s489 = sshll.u32 %s473, 4
          %s490 = int_to_ptr.vmem [resolvable:$true] %s489
          %s491 = sshll.u32 %s488, 4
          %495 = dma.vmem_to_hbm [thread:$0]  (%p485), %s490, %s491, %s487, %s470, 128, 128, 8
        $region40: #{tpu_custom_call.1} parent=27 // pred_fallthru
          _
      $region28: #{tpu_custom_call.1} parent=5 // pred_fallthru
        _
      %p496 = scmp.le.s32.totalorder 2, %s17
      // Predicated region
      $region41: #{tpu_custom_call.1} parent=5 // pred_check
        %p497 = pneg %p496
      $region42: #{tpu_custom_call.1} parent=5 // pred_check_branch
        %499 = sbr.rel (%p497) target = $region44
      $region43: #{tpu_custom_call.1} parent=5 // pred_region
        %s500 = ssub.s32 %s17, 2
        // Predicated region
        $region45: #{tpu_custom_call.1} parent=43 // pred_check
          %p501 = pneg %p98
        $region46: #{tpu_custom_call.1} parent=43 // pred_check_branch
          %503 = sbr.rel (%p501) target = $region48
        $region47: #{tpu_custom_call.1} parent=43 // pred_region
          %s504 = sand.u32 %s83, 1
          %s505 = scalar_lea.sflag [#allocation4], %s504
          %s506 = sand.u32 %s83, 1
          %s507 = smul.addr %s506, 384
          %s508 = scalar_lea.vmem [#allocation7], %s507
          %509 = dma.done %s505, 6144
        $region48: #{tpu_custom_call.1} parent=43 // pred_fallthru
          _
      $region44: #{tpu_custom_call.1} parent=5 // pred_fallthru
        _
    $region6: #{tpu_custom_call.1} parent=1 // loop_footer
      %s21 = sadd.s32 1, %s17
    $region7: #{tpu_custom_call.1} parent=1 // loop_footer_branch
      %16 = sbr.rel target = $region3
    $region8: #{tpu_custom_call.1} parent=1 // loop_exit
      _
    %510 = vsyncpa [#allocation3], 1
    %s511 = scalar_lea.sflag [#allocation3], 1
    %512 = vsyncpa %s511, 1
    %513 = vsyncpa [#allocation6], 1
    %s514 = scalar_lea.sflag [#allocation6], 1
    %515 = vsyncpa %s514, 1
    %516 = vsyncpa [#allocation4], 1
    %s517 = scalar_lea.sflag [#allocation4], 1
    %518 = vsyncpa %s517, 1

</llo_original>
